<compile_context>
chip_gen: v6e
topology: v6e:2x2x1
jax: 0.10.0
libtpu: 0.0.40
codegen_flags: <defaults>
</compile_context>

<pallas_src>
import numpy as np
import jax
import jax.numpy as jnp
from jax.experimental import pallas as pl
from jax.experimental.pallas import tpu as pltpu


def _round_up(x, m):
    return (x + m - 1) // m * m


# --------------------------------------------------------------------------------------
# Stage 1: per-batch projection.  txt[b] = W_text @ hubert[b]^T   -> (H, K_pad) f32 (channels-first)
#          bias[b] = W_spk @ spk[b] + (b_text + b_spk + b_pitch)  -> (H, 1)  f32
# --------------------------------------------------------------------------------------
def project_kernel(hub_ref, spk_ref, wt_ref, ws_ref, bconst_ref, txt_ref, bias_ref):
    t_src = hub_ref.shape[1]
    h = txt_ref.shape[1]
    k_pad = txt_ref.shape[2]

    # (H, C) . (T_src, C) contracted on C -> (H, T_src) directly: no transpose anywhere.
    proj = jax.lax.dot_general(
        wt_ref[...], hub_ref[0],
        dimension_numbers=(((1,), (1,)), ((), ())),
        preferred_element_type=jnp.float32)                          # (H, T_src) f32

    if k_pad > t_src:
        # pad the K axis in registers -> a single unmasked lane-dense full-width store
        proj = jnp.concatenate(
            [proj, jnp.zeros((h, k_pad - t_src), jnp.float32)], axis=1)
    txt_ref[0] = proj

    # speaker encoder + all constant bias terms folded into one per-batch (H, 1) column
    bias_ref[0] = (jnp.dot(ws_ref[...], spk_ref[0], preferred_element_type=jnp.float32)
                   + bconst_ref[...])


# --------------------------------------------------------------------------------------
# Stage 2: per (batch, T_mel-tile) band-limited length regulation + pitch + bias.
# --------------------------------------------------------------------------------------
def feature_kernel(start_ref, m2p_ref, f0_ref, txt_ref, bias_ref, wp_ref, feat_ref, f0d_ref):
    b = pl.program_id(0)
    t = pl.program_id(1)
    k_band = txt_ref.shape[2]
    tm = feat_ref.shape[2]

    # mel2ph / f0 arrive as one per-batch block (DMA amortized over all tiles); slice our tile.
    off_t = pl.multiple_of(t * tm, tm)
    idx = m2p_ref[0, :, pl.ds(off_t, tm)]                            # (1, TM) int32
    f0 = f0_ref[0, :, pl.ds(off_t, tm)]                              # (1, TM) f32

    # band-relative source row: (mel2ph - 1) - band_offset, computed once on the (1, TM) row.
    # mel2ph == 0 becomes negative -> matches nothing -> zero column (the F.pad'ed frame).
    band_off = start_ref[b, t] * k_band                              # scalar from SMEM
    rel = idx - (band_off + 1)

    # one-hot "length regulator" over the band only: onehot[s, t] = (s == rel[t])
    s_iota = jax.lax.broadcasted_iota(jnp.int32, (k_band, tm), 0)
    onehot = (s_iota == rel).astype(jnp.float32)                     # exact 0/1

    # gather of the *pre-projected* hubert: (H, K_band) @ (K_band, TM) on the MXU, f32 acc
    text = jnp.dot(txt_ref[0], onehot, preferred_element_type=jnp.float32)   # (H, TM)

    # denorm_f0 / add_pitch: 2**f0 zeroed at padding frames (exact f32)
    f0d = jnp.where(idx == 0, 0.0, jnp.exp2(f0))                     # (1, TM)

    # epilogue: pitch encoder (1->H) fma + single folded bias, lane-dense f32 stores
    feat_ref[0] = text + wp_ref[...] * f0d + bias_ref[0]
    f0d_ref[0] = f0d


def _band_plan(mel2ph_np, t_mel_pad, tm, k_pad):
    """Static band width + per-(batch, T_mel-tile) band start *block* indices.

    Exploits that DiffSinger's mel2ph is monotonically non-decreasing; stays correct for
    arbitrary indices (the band simply widens, up to the full K_pad)."""
    bsz = mel2ph_np.shape[0]
    n_t = t_mel_pad // tm
    m2p = np.zeros((bsz, t_mel_pad), dtype=np.int64)
    m2p[:, : mel2ph_np.shape[1]] = mel2ph_np
    src = np.maximum(m2p - 1, 0).reshape(bsz, n_t, tm)
    lo, hi = src.min(axis=2), src.max(axis=2)

    align = 256 if k_pad % 256 == 0 else 128      # v6e/v7x MXU is 2x256x256
    k_band = k_pad
    for cand in range(align, k_pad, align):
        if k_pad % cand == 0 and np.all(lo // cand == hi // cand):
            k_band = cand
            break
    starts = (lo // k_band).astype(np.int32)
    return k_band, starts


def feature_embedding_forward(hubert, mel2ph, spk_embed, f0, params, *, tm=512):
    """hubert: [B, T_src, C] f32; mel2ph: [B, T_mel] i32 (monotone, 0 = pad frame);
    spk_embed: [B, S] f32; f0: [B, T_mel] f32.
    Returns (features [B, H, T_mel] f32, f0_denorm [B, T_mel] f32)."""
    B, T_src, C = hubert.shape
    T_mel = mel2ph.shape[1]
    S = spk_embed.shape[1]
    wt, bt, ws, bs, wp, bp = params              # torch convention: wt (H, C), ws (H, S), wp/b* (H, 1)
    H = wt.shape[0]

    # T_mel tile (lane-dense multiple of 128; prefer multiples of 256 on v6e/v7x)
    TM = min(_round_up(tm, 128), _round_up(T_mel, 128))
    n_t = pl.cdiv(T_mel, TM)
    T_mel_pad = n_t * TM
    # contraction dim padded to 256 (extra source columns are zero and never selected)
    K_pad = _round_up(T_src, 256)

    # Band plan for the scalar-prefetched, data-dependent txt index_map.
    # TODO(synk): under jit, pass a precomputed static (k_band, starts) instead of this host read.
    k_band, starts_np = _band_plan(np.asarray(jax.device_get(mel2ph)), T_mel_pad, TM, K_pad)
    starts = jnp.asarray(starts_np)              # (B, n_t) int32, block indices in units of k_band

    b_const = (bt + bs + bp).astype(jnp.float32)                   # folded constant biases (H, 1)
    spk_col = spk_embed.astype(jnp.float32).reshape(B, S, 1)

    # ---- stage 1: per-batch channels-first projection ----
    # TODO(synk): tile T_src here for very long sources (keeps the hubert block out of v5e's
    # 16 MiB scoped-VMEM default and lets the hubert DMA pipeline).
    txt, bias = pl.pallas_call(
        project_kernel,
        out_shape=(jax.ShapeDtypeStruct((B, H, K_pad), jnp.float32),
                   jax.ShapeDtypeStruct((B, H, 1), jnp.float32)),
        grid_spec=pltpu.PrefetchScalarGridSpec(
            num_scalar_prefetch=0,
            grid=(B,),
            in_specs=[
                pl.BlockSpec((1, T_src, C), lambda b: (b, 0, 0)),    # hubert, natural layout
                pl.BlockSpec((1, S, 1), lambda b: (b, 0, 0)),        # spk column
                pl.BlockSpec((H, C), lambda b: (0, 0)),              # W_text (resident)
                pl.BlockSpec((H, S), lambda b: (0, 0)),              # W_spk
                pl.BlockSpec((H, 1), lambda b: (0, 0)),              # b_text + b_spk + b_pitch
            ],
            out_specs=[
                pl.BlockSpec((1, H, K_pad), lambda b: (b, 0, 0)),
                pl.BlockSpec((1, H, 1), lambda b: (b, 0, 0)),
            ],
        ),
        compiler_params=pltpu.CompilerParams(
            dimension_semantics=("parallel",),
            vmem_limit_bytes=32 * 1024 * 1024),
    )(hubert.astype(jnp.float32), spk_col, wt.astype(jnp.float32),
      ws.astype(jnp.float32), b_const)

    # pad only the tiny per-frame scalar streams so the per-batch blocks are lane-dense
    pad_t = T_mel_pad - T_mel
    m2p = jnp.pad(mel2ph.astype(jnp.int32), ((0, 0), (0, pad_t))).reshape(B, 1, T_mel_pad)
    f0_in = jnp.pad(f0.astype(jnp.float32), ((0, 0), (0, pad_t))).reshape(B, 1, T_mel_pad)

    # ---- stage 2: tiled, band-limited length regulation + feature sum ----
    feats, f0d = pl.pallas_call(
        feature_kernel,
        out_shape=(jax.ShapeDtypeStruct((B, H, T_mel), jnp.float32),
                   jax.ShapeDtypeStruct((B, 1, T_mel), jnp.float32)),
        grid_spec=pltpu.PrefetchScalarGridSpec(
            num_scalar_prefetch=1,
            grid=(B, n_t),
            in_specs=[
                pl.BlockSpec((1, 1, T_mel_pad), lambda b, t, st: (b, 0, 0)),      # mel2ph, per batch
                pl.BlockSpec((1, 1, T_mel_pad), lambda b, t, st: (b, 0, 0)),      # f0, per batch
                pl.BlockSpec((1, H, k_band), lambda b, t, st: (b, 0, st[b, t])),  # projected hubert band
                pl.BlockSpec((1, H, 1), lambda b, t, st: (b, 0, 0)),              # folded per-batch bias
                pl.BlockSpec((H, 1), lambda b, t, st: (0, 0)),                    # W_pitch
            ],
            out_specs=[
                pl.BlockSpec((1, H, TM), lambda b, t, st: (b, 0, t)),             # features [B, H, T_mel]
                pl.BlockSpec((1, 1, TM), lambda b, t, st: (b, 0, t)),             # f0_denorm
            ],
        ),
        compiler_params=pltpu.CompilerParams(
            dimension_semantics=("parallel", "arbitrary"),
            vmem_limit_bytes=32 * 1024 * 1024),
    )(starts, m2p, f0_in, txt, bias, wp.astype(jnp.float32))

    # outputs are exact-size (only the last tile is a masked partial store) -> no slicing pass
    return feats, f0d[:, 0, :]


def reference_forward(hubert, mel2ph, spk_embed, f0, params):
    """Pure-JAX f32 reference mirroring the PyTorch module."""
    wt, bt, ws, bs, wp, bp = params
    hub_pad = jnp.pad(hubert, ((0, 0), (1, 0), (0, 0)))                     # [B, T_src+1, C]
    decoder_inp = jnp.take_along_axis(hub_pad, mel2ph[:, :, None], axis=1)  # [B, T_mel, C]
    f0_denorm = jnp.where(mel2ph == 0, 0.0, 2.0 ** f0)                      # [B, T_mel]
    text = jnp.einsum('btc,hc->bth', decoder_inp, wt) + bt[:, 0]
    spk = (jnp.einsum('bs,hs->bh', spk_embed, ws) + bs[:, 0])[:, None, :]
    pitch = f0_denorm[:, :, None] * wp[:, 0] + bp[:, 0]
    features = text + spk + pitch                                           # [B, T_mel, H]
    return jnp.transpose(features, (0, 2, 1)), f0_denorm


if __name__ == "__main__":
    B, T_src, T_mel, C, S, H = 2, 40, 300, 32, 16, 32

    key = jax.random.PRNGKey(0)
    k_hub, k_m2p, k_spk, k_f0, k_wt, k_bt, k_ws, k_bs, k_wp, k_bp = jax.random.split(key, 10)

    hubert = jax.random.normal(k_hub, (B, T_src, C), dtype=jnp.float32)
    # DiffSinger's length regulator emits a monotone non-decreasing mel2ph in [0, T_src];
    # 0 marks padding frames (zero hubert row, zeroed f0).
    mel2ph = jnp.sort(
        jax.random.randint(k_m2p, (B, T_mel), 0, T_src + 1, dtype=jnp.int32), axis=1)
    spk_embed = jax.random.normal(k_spk, (B, S), dtype=jnp.float32)
    f0 = jax.random.uniform(k_f0, (B, T_mel), dtype=jnp.float32, minval=4.0, maxval=8.0)

    # deterministic synthetic encoder weights (torch convention: [out, in])
    params = (
        0.1 * jax.random.normal(k_wt, (H, C), dtype=jnp.float32),
        0.1 * jax.random.normal(k_bt, (H, 1), dtype=jnp.float32),
        0.1 * jax.random.normal(k_ws, (H, S), dtype=jnp.float32),
        0.1 * jax.random.normal(k_bs, (H, 1), dtype=jnp.float32),
        0.1 * jax.random.normal(k_wp, (H, 1), dtype=jnp.float32),
        0.1 * jax.random.normal(k_bp, (H, 1), dtype=jnp.float32),
    )

    # tm=128 so the test exercises multiple T_mel tiles plus a partial (masked) last tile
    feats_t, f0_denorm = feature_embedding_forward(hubert, mel2ph, spk_embed, f0, params, tm=128)
    feats_t = jax.block_until_ready(feats_t)
    f0_denorm = jax.block_until_ready(f0_denorm)

    ref_feats, ref_f0 = reference_forward(hubert, mel2ph, spk_embed, f0, params)

    assert feats_t.shape == (B, H, T_mel) and f0_denorm.shape == (B, T_mel)
    # matmuls run with f32 operands; keep a modest tolerance for MXU f32 pass reduction on HW
    assert jnp.allclose(feats_t, ref_feats, atol=2e-2, rtol=2e-2)
    # f0_denorm is computed fully on the VPU in f32 -> tight tolerance
    assert jnp.allclose(f0_denorm, ref_f0, atol=1e-3, rtol=1e-5)

    print("KERNEL_OK")
</pallas_src>

<mosaic_0001>
module attributes {stable_mosaic.version = 11 : i64} {
  func.func @project_kernel(%arg0: i32, %arg1: memref<1x40x32xf32, #tpu.memory_space<vmem>>, %arg2: memref<1x16x1xf32, #tpu.memory_space<vmem>>, %arg3: memref<32x32xf32, #tpu.memory_space<vmem>>, %arg4: memref<32x16xf32, #tpu.memory_space<vmem>>, %arg5: memref<32x1xf32, #tpu.memory_space<vmem>>, %arg6: memref<1x32x256xf32, #tpu.memory_space<vmem>>, %arg7: memref<1x32x1xf32, #tpu.memory_space<vmem>>) attributes {dimension_semantics = [#tpu.dimension_semantics<parallel>], iteration_bounds = array<i64: 2>, scalar_prefetch = 0 : i64, scratch_operands = 0 : i64, tpu.core_type = #tpu.core_type<tc>, window_params = [{transform_indices = @transform_0, window_bounds = array<i64: 1, 40, 32>}, {transform_indices = @transform_1, window_bounds = array<i64: 1, 16, 1>}, {pipeline_mode = #tpu.pipeline_mode<synchronous>, transform_indices = @transform_2, window_bounds = array<i64: 32, 32>}, {pipeline_mode = #tpu.pipeline_mode<synchronous>, transform_indices = @transform_3, window_bounds = array<i64: 32, 16>}, {pipeline_mode = #tpu.pipeline_mode<synchronous>, transform_indices = @transform_4, window_bounds = array<i64: 32, 1>}, {transform_indices = @transform_5, window_bounds = array<i64: 1, 32, 256>}, {transform_indices = @transform_6, window_bounds = array<i64: 1, 32, 1>}]} {
    %c0 = arith.constant 0 : index
    %c0_0 = arith.constant 0 : index
    %0 = vector.load %arg3[%c0, %c0_0] : memref<32x32xf32, #tpu.memory_space<vmem>>, vector<32x32xf32>
    %c0_1 = arith.constant 0 : index
    %c0_2 = arith.constant 0 : index
    %c0_3 = arith.constant 0 : index
    %1 = vector.load %arg1[%c0_1, %c0_2, %c0_3] : memref<1x40x32xf32, #tpu.memory_space<vmem>>, vector<1x40x32xf32>
    %2 = vector.shape_cast %1 : vector<1x40x32xf32> to vector<40x32xf32>
    %cst = arith.constant dense<0.000000e+00> : vector<32x40xf32>
    %3 = tpu.matmul %0, %2, %cst {dimension_numbers = #tpu.dot_dimension_numbers<[1], [1], [0], [0], [0, 0, 1, 0], [], []>} : vector<32x32xf32>, vector<40x32xf32>, vector<32x40xf32> -> vector<32x40xf32>
    %cst_4 = arith.constant 0.000000e+00 : f32
    %4 = vector.broadcast %cst_4 : f32 to vector<32x216xf32>
    %5 = tpu.concatenate %3, %4 in 1 : vector<32x40xf32>, vector<32x216xf32> -> vector<32x256xf32>
    %c0_5 = arith.constant 0 : index
    %c0_6 = arith.constant 0 : index
    %c0_7 = arith.constant 0 : index
    %6 = vector.load %arg6[%c0_5, %c0_6, %c0_7] : memref<1x32x256xf32, #tpu.memory_space<vmem>>, vector<1x32x256xf32>
    %7 = vector.shape_cast %6 : vector<1x32x256xf32> to vector<32x256xf32>
    %8 = vector.shape_cast %5 : vector<32x256xf32> to vector<1x32x256xf32>
    tpu.vector_store %arg6[%c0_5, %c0_6, %c0_7], %8 {strides = array<i32>} : memref<1x32x256xf32, #tpu.memory_space<vmem>>, vector<1x32x256xf32>,
    %c0_8 = arith.constant 0 : index
    %c0_9 = arith.constant 0 : index
    %9 = vector.load %arg4[%c0_8, %c0_9] : memref<32x16xf32, #tpu.memory_space<vmem>>, vector<32x16xf32>
    %c0_10 = arith.constant 0 : index
    %c0_11 = arith.constant 0 : index
    %c0_12 = arith.constant 0 : index
    %10 = vector.load %arg2[%c0_10, %c0_11, %c0_12] : memref<1x16x1xf32, #tpu.memory_space<vmem>>, vector<1x16x1xf32>
    %11 = vector.shape_cast %10 : vector<1x16x1xf32> to vector<16x1xf32>
    %cst_13 = arith.constant dense<0.000000e+00> : vector<32x1xf32>
    %12 = tpu.matmul %9, %11, %cst_13 {dimension_numbers = #tpu.dot_dimension_numbers<[1], [0], [0], [1], [0, 0, 1, 1], [], []>} : vector<32x16xf32>, vector<16x1xf32>, vector<32x1xf32> -> vector<32x1xf32>
    %c0_14 = arith.constant 0 : index
    %c0_15 = arith.constant 0 : index
    %13 = vector.load %arg5[%c0_14, %c0_15] : memref<32x1xf32, #tpu.memory_space<vmem>>, vector<32x1xf32>
    %14 = arith.addf %12, %13 : vector<32x1xf32>
    %c0_16 = arith.constant 0 : index
    %c0_17 = arith.constant 0 : index
    %c0_18 = arith.constant 0 : index
    %15 = vector.load %arg7[%c0_16, %c0_17, %c0_18] : memref<1x32x1xf32, #tpu.memory_space<vmem>>, vector<1x32x1xf32>
    %16 = vector.shape_cast %15 : vector<1x32x1xf32> to vector<32x1xf32>
    %17 = vector.shape_cast %14 : vector<32x1xf32> to vector<1x32x1xf32>
    tpu.vector_store %arg7[%c0_16, %c0_17, %c0_18], %17 {strides = array<i32>} : memref<1x32x1xf32, #tpu.memory_space<vmem>>, vector<1x32x1xf32>,
    return
  }
  func.func @transform_0(%arg0: i32) -> (i32, i32, i32) {
    %c0_i32 = arith.constant 0 : i32
    %c0_i32_0 = arith.constant 0 : i32
    %c0_i32_1 = arith.constant 0 : i32
    return %arg0, %c0_i32, %c0_i32_0 : i32, i32, i32
  }
  func.func @transform_1(%arg0: i32) -> (i32, i32, i32) {
    %c0_i32 = arith.constant 0 : i32
    %c0_i32_0 = arith.constant 0 : i32
    %c0_i32_1 = arith.constant 0 : i32
    return %arg0, %c0_i32, %c0_i32_0 : i32, i32, i32
  }
  func.func @transform_2(%arg0: i32) -> (i32, i32) {
    %c0_i32 = arith.constant 0 : i32
    %c0_i32_0 = arith.constant 0 : i32
    %c0_i32_1 = arith.constant 0 : i32
    return %c0_i32, %c0_i32_0 : i32, i32
  }
  func.func @transform_3(%arg0: i32) -> (i32, i32) {
    %c0_i32 = arith.constant 0 : i32
    %c0_i32_0 = arith.constant 0 : i32
    %c0_i32_1 = arith.constant 0 : i32
    return %c0_i32, %c0_i32_0 : i32, i32
  }
  func.func @transform_4(%arg0: i32) -> (i32, i32) {
    %c0_i32 = arith.constant 0 : i32
    %c0_i32_0 = arith.constant 0 : i32
    %c0_i32_1 = arith.constant 0 : i32
    return %c0_i32, %c0_i32_0 : i32, i32
  }
  func.func @transform_5(%arg0: i32) -> (i32, i32, i32) {
    %c0_i32 = arith.constant 0 : i32
    %c0_i32_0 = arith.constant 0 : i32
    %c0_i32_1 = arith.constant 0 : i32
    return %arg0, %c0_i32, %c0_i32_0 : i32, i32, i32
  }
  func.func @transform_6(%arg0: i32) -> (i32, i32, i32) {
    %c0_i32 = arith.constant 0 : i32
    %c0_i32_0 = arith.constant 0 : i32
    %c0_i32_1 = arith.constant 0 : i32
    return %arg0, %c0_i32, %c0_i32_0 : i32, i32, i32
  }
}

</mosaic_0001>

<llo_original>
// kernel: tpu_custom_call.1
$region0: #{tpu_custom_call.1}
  #allocation0 [shape = 'u32[]', space=smem, size = 0x4, offset = 0x4, fixed_abs, tag = 'smem constant byte address 0x4 - core index']
  #allocation1 [shape = 'u32[144,128]{1,0:T(1,128)}', space=vmem, size = 0x12000, scoped, tag = 'internal scratch']
  %s0 = inlined_call_operand.vmem [shape: f32[2,40,32], index: 0, kind: input, shape index: {}]
  %s1 = inlined_call_operand.vmem [shape: f32[2,16,1], index: 1, kind: input, shape index: {}]
  %s2 = inlined_call_operand.vmem [shape: f32[32,32], index: 2, kind: input, shape index: {}]
  %s3 = inlined_call_operand.vmem [shape: f32[32,16], index: 3, kind: input, shape index: {}]
  %s4 = inlined_call_operand.vmem [shape: f32[32,1], index: 4, kind: input, shape index: {}]
  %s5 = inlined_call_operand.hbm [shape: f32[2,32,256], index: 5, kind: output, shape index: {0}]
  %s6 = inlined_call_operand.vmem [shape: f32[2,32,1], index: 6, kind: output, shape index: {1}]
  %7 = xla_tuple %s5, %s6
  %s8 = sld [smem:[#allocation0]]
  $region61: #{tpu_custom_call.1} parent=0
    _
  %s10 = ssub.s32 1, %s8
  %s11 = scalar_select 0, %s10, %s8
  $region1: #{tpu_custom_call.1} parent=0
    #allocation2 [shape = 'u8[65536]{0}', space=vmem, size = 0x10000, scoped, tag = 'output window, operand 0']
    #allocation3 [shape = 's32[2]{0}', space=sflag, size = 0x8, scoped, tag = 'scoped memory for tpu_custom_call.1']
    %12 = vsyncpa [#allocation3], 0
    %s13 = scalar_lea.sflag [#allocation3], 1
    %14 = vsyncpa %s13, 0
    loop: start=0, step=1, limit=4
    $region2: #{tpu_custom_call.1} parent=1 // loop_pre_header
      _
    $region3: #{tpu_custom_call.1} parent=1 // loop_header
      %s16 = sphi 0, %s20
      %p17 = scmp.ge.s32.totalorder %s16, 4
      %s26 = sphi 0, %s28
      %s29 = sphi 0, %s26
      %s30 = sphi 0, %s29
      %s46 = sphi 0, %s30
      %s52 = sphi 0, %s54
      %s55 = sphi 0, %s52
      %s56 = sphi 0, %s55
      %s72 = sphi 0, %s56
      %s76 = sphi 0, %s76
      %s78 = sphi 0, %s76
      %s79 = sphi 0, %s78
      %s93 = sphi 0, %s79
      %s97 = sphi 0, %s97
      %s99 = sphi 0, %s97
      %s100 = sphi 0, %s99
      %s114 = sphi 0, %s100
      %s118 = sphi 0, %s118
      %s120 = sphi 0, %s118
      %s121 = sphi 0, %s120
      %s135 = sphi 0, %s121
      %s141 = sphi 0, %s143
      %s144 = sphi 0, %s141
      %s145 = sphi 0, %s144
      %s161 = sphi 0, %s145
      %s167 = sphi 0, %s169
      %s170 = sphi 0, %s167
      %s171 = sphi 0, %s170
      %s187 = sphi 0, %s171
    $region4: #{tpu_custom_call.1} parent=1 // loop_header_branch
      %19 = sbr.rel (%p17) target = $region8
    $region5: #{tpu_custom_call.1} parent=1 // loop_body
      %s21 = ssub.s32 %s16, 1
      %s22 = ssub.s32 %s16, 2
      %s23 = sadd.s32 %s16, 1
      %s24 = ssub.s32 %s16, %s23
      %p25 = scmp.eq.s32.totalorder %s24, 0
      %s27 = sadd.s32 %s26, 1
      %s28 = scalar_select %p25, %s26, %s27
      %p31 = pneg %p25
      %p32 = scmp.eq.s32.totalorder %s16, 1
      %p33 = por %p31, %p32
      %p34 = scmp.ne.s32.totalorder %s26, %s29
      %p35 = scmp.eq.s32.totalorder %s16, 0
      %p36 = por %p34, %p35
      %p37 = scmp.ne.s32.totalorder %s26, %s29
      %p38 = scmp.eq.s32.totalorder %s21, 1
      %p39 = por %p37, %p38
      %p40 = scmp.ne.s32.totalorder %s29, %s30
      %p41 = scmp.eq.s32.totalorder %s21, 0
      %p42 = por %p40, %p41
      %p43 = scmp.ne.s32.totalorder %s29, %s30
      %p44 = scmp.eq.s32.totalorder %s22, 1
      %p45 = por %p43, %p44
      %p47 = scmp.ne.s32.totalorder %s30, %s46
      %p48 = scmp.eq.s32.totalorder %s22, 0
      %p49 = por %p47, %p48
      %s50 = ssub.s32 %s16, %s23
      %p51 = scmp.eq.s32.totalorder %s50, 0
      %s53 = sadd.s32 %s52, 1
      %s54 = scalar_select %p51, %s52, %s53
      %p57 = pneg %p51
      %p58 = scmp.eq.s32.totalorder %s16, 1
      %p59 = por %p57, %p58
      %p60 = scmp.ne.s32.totalorder %s52, %s55
      %p61 = scmp.eq.s32.totalorder %s16, 0
      %p62 = por %p60, %p61
      %p63 = scmp.ne.s32.totalorder %s52, %s55
      %p64 = scmp.eq.s32.totalorder %s21, 1
      %p65 = por %p63, %p64
      %p66 = scmp.ne.s32.totalorder %s55, %s56
      %p67 = scmp.eq.s32.totalorder %s21, 0
      %p68 = por %p66, %p67
      %p69 = scmp.ne.s32.totalorder %s55, %s56
      %p70 = scmp.eq.s32.totalorder %s22, 1
      %p71 = por %p69, %p70
      %p73 = scmp.ne.s32.totalorder %s56, %s72
      %p74 = scmp.eq.s32.totalorder %s22, 0
      %p75 = por %p73, %p74
      %s77 = sadd.s32 %s76, 1
      %p80 = scmp.eq.s32.totalorder %s16, 1
      %p81 = scmp.ne.s32.totalorder %s76, %s78
      %p82 = scmp.eq.s32.totalorder %s16, 0
      %p83 = por %p81, %p82
      %p84 = scmp.ne.s32.totalorder %s76, %s78
      %p85 = scmp.eq.s32.totalorder %s21, 1
      %p86 = por %p84, %p85
      %p87 = scmp.ne.s32.totalorder %s78, %s79
      %p88 = scmp.eq.s32.totalorder %s21, 0
      %p89 = por %p87, %p88
      %p90 = scmp.ne.s32.totalorder %s78, %s79
      %p91 = scmp.eq.s32.totalorder %s22, 1
      %p92 = por %p90, %p91
      %p94 = scmp.ne.s32.totalorder %s79, %s93
      %p95 = scmp.eq.s32.totalorder %s22, 0
      %p96 = por %p94, %p95
      %s98 = sadd.s32 %s97, 1
      %p101 = scmp.eq.s32.totalorder %s16, 1
      %p102 = scmp.ne.s32.totalorder %s97, %s99
      %p103 = scmp.eq.s32.totalorder %s16, 0
      %p104 = por %p102, %p103
      %p105 = scmp.ne.s32.totalorder %s97, %s99
      %p106 = scmp.eq.s32.totalorder %s21, 1
      %p107 = por %p105, %p106
      %p108 = scmp.ne.s32.totalorder %s99, %s100
      %p109 = scmp.eq.s32.totalorder %s21, 0
      %p110 = por %p108, %p109
      %p111 = scmp.ne.s32.totalorder %s99, %s100
      %p112 = scmp.eq.s32.totalorder %s22, 1
      %p113 = por %p111, %p112
      %p115 = scmp.ne.s32.totalorder %s100, %s114
      %p116 = scmp.eq.s32.totalorder %s22, 0
      %p117 = por %p115, %p116
      %s119 = sadd.s32 %s118, 1
      %p122 = scmp.eq.s32.totalorder %s16, 1
      %p123 = scmp.ne.s32.totalorder %s118, %s120
      %p124 = scmp.eq.s32.totalorder %s16, 0
      %p125 = por %p123, %p124
      %p126 = scmp.ne.s32.totalorder %s118, %s120
      %p127 = scmp.eq.s32.totalorder %s21, 1
      %p128 = por %p126, %p127
      %p129 = scmp.ne.s32.totalorder %s120, %s121
      %p130 = scmp.eq.s32.totalorder %s21, 0
      %p131 = por %p129, %p130
      %p132 = scmp.ne.s32.totalorder %s120, %s121
      %p133 = scmp.eq.s32.totalorder %s22, 1
      %p134 = por %p132, %p133
      %p136 = scmp.ne.s32.totalorder %s121, %s135
      %p137 = scmp.eq.s32.totalorder %s22, 0
      %p138 = por %p136, %p137
      %s139 = ssub.s32 %s16, %s23
      %p140 = scmp.eq.s32.totalorder %s139, 0
      %s142 = sadd.s32 %s141, 1
      %s143 = scalar_select %p140, %s141, %s142
      %p146 = pneg %p140
      %p147 = scmp.eq.s32.totalorder %s16, 1
      %p148 = por %p146, %p147
      %p149 = scmp.ne.s32.totalorder %s141, %s144
      %p150 = scmp.eq.s32.totalorder %s16, 0
      %p151 = por %p149, %p150
      %p152 = scmp.ne.s32.totalorder %s141, %s144
      %p153 = scmp.eq.s32.totalorder %s21, 1
      %p154 = por %p152, %p153
      %p155 = scmp.ne.s32.totalorder %s144, %s145
      %p156 = scmp.eq.s32.totalorder %s21, 0
      %p157 = por %p155, %p156
      %p158 = scmp.ne.s32.totalorder %s144, %s145
      %p159 = scmp.eq.s32.totalorder %s22, 1
      %p160 = por %p158, %p159
      %p162 = scmp.ne.s32.totalorder %s145, %s161
      %p163 = scmp.eq.s32.totalorder %s22, 0
      %p164 = por %p162, %p163
      %s165 = ssub.s32 %s16, %s23
      %p166 = scmp.eq.s32.totalorder %s165, 0
      %s168 = sadd.s32 %s167, 1
      %s169 = scalar_select %p166, %s167, %s168
      %p172 = pneg %p166
      %p173 = scmp.eq.s32.totalorder %s16, 1
      %p174 = por %p172, %p173
      %p175 = scmp.ne.s32.totalorder %s167, %s170
      %p176 = scmp.eq.s32.totalorder %s16, 0
      %p177 = por %p175, %p176
      %p178 = scmp.ne.s32.totalorder %s167, %s170
      %p179 = scmp.eq.s32.totalorder %s21, 1
      %p180 = por %p178, %p179
      %p181 = scmp.ne.s32.totalorder %s170, %s171
      %p182 = scmp.eq.s32.totalorder %s21, 0
      %p183 = por %p181, %p182
      %p184 = scmp.ne.s32.totalorder %s170, %s171
      %p185 = scmp.eq.s32.totalorder %s22, 1
      %p186 = por %p184, %p185
      %p188 = scmp.ne.s32.totalorder %s171, %s187
      %p189 = scmp.eq.s32.totalorder %s22, 0
      %p190 = por %p188, %p189
      %p191 = scmp.le.s32.totalorder 1, %s16
      %p192 = scmp.lt.s32.totalorder %s16, 3
      %p193 = pnand %p191, %p192
      %p194 = pneg %p193
      // Predicated region
      $region9: #{tpu_custom_call.1} parent=5 // pred_check
        _
      $region10: #{tpu_custom_call.1} parent=5 // pred_check_branch
        %196 = sbr.rel (%p193) target = $region12
      $region11: #{tpu_custom_call.1} parent=5 // pred_region
        %s197 = ssub.s32 %s16, 1
        // Predicated region
        $region13: #{tpu_custom_call.1} parent=11 // pred_check
          %p198 = pneg %p89
        $region14: #{tpu_custom_call.1} parent=11 // pred_check_branch
          %200 = sbr.rel (%p198) target = $region16
        $region15: #{tpu_custom_call.1} parent=11 // pred_region
          _
        $region16: #{tpu_custom_call.1} parent=11 // pred_fallthru
          _
        // Predicated region
        $region17: #{tpu_custom_call.1} parent=11 // pred_check
          %p201 = pneg %p110
        $region18: #{tpu_custom_call.1} parent=11 // pred_check_branch
          %203 = sbr.rel (%p201) target = $region20
        $region19: #{tpu_custom_call.1} parent=11 // pred_region
          _
        $region20: #{tpu_custom_call.1} parent=11 // pred_fallthru
          _
        // Predicated region
        $region21: #{tpu_custom_call.1} parent=11 // pred_check
          %p204 = pneg %p131
        $region22: #{tpu_custom_call.1} parent=11 // pred_check_branch
          %206 = sbr.rel (%p204) target = $region24
        $region23: #{tpu_custom_call.1} parent=11 // pred_region
          _
        $region24: #{tpu_custom_call.1} parent=11 // pred_fallthru
          _
      $region12: #{tpu_custom_call.1} parent=5 // pred_fallthru
        _
      %p207 = scmp.lt.s32.totalorder %s16, 2
      // Predicated region
      $region25: #{tpu_custom_call.1} parent=5 // pred_check
        %p208 = pneg %p207
      $region26: #{tpu_custom_call.1} parent=5 // pred_check_branch
        %210 = sbr.rel (%p208) target = $region28
      $region27: #{tpu_custom_call.1} parent=5 // pred_region
        // Predicated region
        $region29: #{tpu_custom_call.1} parent=27 // pred_check
          %p211 = pneg %p36
        $region30: #{tpu_custom_call.1} parent=27 // pred_check_branch
          %213 = sbr.rel (%p211) target = $region32
        $region31: #{tpu_custom_call.1} parent=27 // pred_region
          %p214 = scmp.lt.s32.totalorder %s16, 1
          %s215 = scalar_select %p214, %s16, 1
          %s216 = smul.addr %s215, 5
          %s217 = smul.addr %s216, 8
          %s218 = scalar_lea.vmem %s0, %s217
        $region32: #{tpu_custom_call.1} parent=27 // pred_fallthru
          _
        // Predicated region
        $region33: #{tpu_custom_call.1} parent=27 // pred_check
          %p219 = pneg %p62
        $region34: #{tpu_custom_call.1} parent=27 // pred_check_branch
          %221 = sbr.rel (%p219) target = $region36
        $region35: #{tpu_custom_call.1} parent=27 // pred_region
          %p222 = scmp.lt.s32.totalorder %s16, 1
          %s223 = scalar_select %p222, %s16, 1
          %s224 = smul.addr %s223, 2
          %s225 = smul.addr %s224, 8
          %s226 = scalar_lea.vmem %s1, %s225
        $region36: #{tpu_custom_call.1} parent=27 // pred_fallthru
          _
      $region28: #{tpu_custom_call.1} parent=5 // pred_fallthru
        _
      %p227 = scmp.le.s32.totalorder 1, %s16
      %p228 = scmp.lt.s32.totalorder %s16, 3
      %p229 = pnand %p227, %p228
      %p230 = pneg %p229
      // Predicated region
      $region37: #{tpu_custom_call.1} parent=5 // pred_check
        _
      $region38: #{tpu_custom_call.1} parent=5 // pred_check_branch
        %232 = sbr.rel (%p229) target = $region40
      $region39: #{tpu_custom_call.1} parent=5 // pred_region
        %s233 = ssub.s32 %s16, 1
        %p234 = scmp.lt.s32.totalorder %s21, 1
        %s235 = scalar_select %p234, %s21, 1
        %s236 = smul.addr %s235, 5
        %s237 = smul.addr %s236, 8
        %s238 = scalar_lea.vmem %s0, %s237
        %p239 = pneg %p42
        %p240 = pneg %p39
        %p241 = scmp.lt.s32.totalorder %s21, 1
        %s242 = scalar_select %p241, %s21, 1
        %s243 = smul.addr %s242, 2
        %s244 = smul.addr %s243, 8
        %s245 = scalar_lea.vmem %s1, %s244
        %p246 = pneg %p68
        %p247 = pneg %p65
        %p248 = pneg %p89
        %p249 = pneg %p86
        %p250 = pneg %p110
        %p251 = pneg %p107
        %p252 = pneg %p131
        %p253 = pneg %p128
        %p254 = pneg %p157
        %p255 = pneg %p154
        %s256 = sand.u32 %s144, 1
        %s257 = scalar_lea.sflag [#allocation3], %s256
        %s258 = sand.u32 %s144, 1
        %s259 = smul.addr %s258, 64
        %s260 = scalar_lea.vmem [#allocation2], %s259
        %p261 = pneg %p183
        %p262 = pneg %p180
        %p263 = scmp.lt.s32.totalorder %s21, 1
        %s264 = scalar_select %p263, %s21, 1
        %s265 = smul.addr %s264, 4
        %s266 = smul.addr %s265, 8
        %s267 = scalar_lea.vmem %s6, %s266
        %p268 = scmp.lt.s32.totalorder %s21, 1
        %s269 = scalar_select %p268, %s21, 1
        %s270 = smul.addr %s269, 5
        %s271 = smul.addr %s270, 8
        %s272 = scalar_lea.vmem %s0, %s271
        %p273 = scmp.lt.s32.totalorder %s21, 1
        %s274 = scalar_select %p273, %s21, 1
        %s275 = smul.addr %s274, 2
        %s276 = smul.addr %s275, 8
        %s277 = scalar_lea.vmem %s1, %s276
        %p278 = scmp.lt.s32.totalorder %s21, 1
        %s279 = scalar_select %p278, %s21, 1
        %s280 = smul.addr %s279, 4
        %s281 = smul.addr %s280, 8
        %s282 = scalar_lea.vmem %s6, %s281
        %v283 = vld [vmem:[%s2] sm:$0xff]
        %v284 = vld [vmem:[%s2 + $0x8] sm:$0xff]
        %v285 = vld [vmem:[%s2 + $0x10] sm:$0xff]
        %v286 = vld [vmem:[%s2 + $0x18] sm:$0xff]
        %v287 = vld [vmem:[%s272] sm:$0xff]
        %v288 = vld [vmem:[%s272 + $0x8] sm:$0xff]
        %v289 = vld [vmem:[%s272 + $0x10] sm:$0xff]
        %v290 = vld [vmem:[%s272 + $0x18] sm:$0xff]
        %v291 = vld [vmem:[%s272 + $0x20] sm:$0xff]
        %vm292 = vcmask 261120
        %v294 = vsel %vm292, %v283, 0
        %v297 = vsel %vm292, %v284, 0
        %v300 = vsel %vm292, %v285, 0
        %v303 = vsel %vm292, %v286, 0
        %v306 = vsel %vm292, %v287, 0
        %v309 = vsel %vm292, %v288, 0
        %v312 = vsel %vm292, %v289, 0
        %v315 = vsel %vm292, %v290, 0
        %v318 = vsel %vm292, %v291, 0
        %320 = vmatprep.subr.mxu0 0.0
        %321 = vmatpush1.xpose.msra.mxu0 0.0
        %322 = vmatprep.subr.mxu0 0.0
        %323 = vmatpush1.xpose.msra.mxu0 0.0
        %324 = vmatprep.subr.mxu0 0.0
        %325 = vmatpush1.xpose.msra.mxu0 0.0
        %326 = vmatprep.subr.mxu0 0.0
        %327 = vmatpush1.xpose.msra.mxu0 0.0
        %328 = vmatprep.subr.mxu0 0.0
        %329 = vmatpush1.xpose.msra.mxu0 0.0
        %330 = vmatprep.subr.mxu0 0.0
        %331 = vmatpush1.xpose.msra.mxu0 0.0
        %332 = vmatprep.subr.mxu0 0.0
        %333 = vmatpush1.xpose.msra.mxu0 0.0
        %334 = vmatprep.subr.mxu0 0.0
        %335 = vmatpush1.xpose.msra.mxu0 0.0
        %336 = vmatprep.subr.mxu0 0.0
        %337 = vmatpush1.xpose.msra.mxu0 0.0
        %338 = vmatprep.subr.mxu0 0.0
        %339 = vmatpush1.xpose.msra.mxu0 0.0
        %340 = vmatprep.subr.mxu0 0.0
        %341 = vmatpush1.xpose.msra.mxu0 0.0
        %342 = vmatprep.subr.mxu0 0.0
        %343 = vmatpush1.xpose.msra.mxu0 %v318
        %344 = vmatprep.subr.mxu0 0.0
        %345 = vmatpush1.xpose.msra.mxu0 %v315
        %346 = vmatprep.subr.mxu0 0.0
        %347 = vmatpush1.xpose.msra.mxu0 %v312
        %348 = vmatprep.subr.mxu0 0.0
        %349 = vmatpush1.xpose.msra.mxu0 %v309
        %350 = vmatprep.subr.mxu0 0.0
        %351 = vmatpush1.xpose.msra.mxu0 %v306
        %352 = vmatprep.subr.mxu0 0.0
        %353 = vmatpush2.xpose.msra.mxu0 0.0
        %354 = vmatprep.subr.mxu0 0.0
        %355 = vmatpush2.xpose.msra.mxu0 0.0
        %356 = vmatprep.subr.mxu0 0.0
        %357 = vmatpush2.xpose.msra.mxu0 0.0
        %358 = vmatprep.subr.mxu0 0.0
        %359 = vmatpush2.xpose.msra.mxu0 0.0
        %360 = vmatprep.subr.mxu0 0.0
        %361 = vmatpush2.xpose.msra.mxu0 0.0
        %362 = vmatprep.subr.mxu0 0.0
        %363 = vmatpush2.xpose.msra.mxu0 0.0
        %364 = vmatprep.subr.mxu0 0.0
        %365 = vmatpush2.xpose.msra.mxu0 0.0
        %366 = vmatprep.subr.mxu0 0.0
        %367 = vmatpush2.xpose.msra.mxu0 0.0
        %368 = vmatprep.subr.mxu0 0.0
        %369 = vmatpush2.xpose.msra.mxu0 0.0
        %370 = vmatprep.subr.mxu0 0.0
        %371 = vmatpush2.xpose.msra.mxu0 0.0
        %372 = vmatprep.subr.mxu0 0.0
        %373 = vmatpush2.xpose.msra.mxu0 0.0
        %374 = vmatprep.subr.mxu0 0.0
        %375 = vmatpush2.xpose.msra.mxu0 0.0
        %376 = vmatprep.subr.mxu0 0.0
        %377 = vmatpush2.xpose.msra.mxu0 0.0
        %378 = vmatprep.subr.mxu0 0.0
        %379 = vmatpush2.xpose.msra.mxu0 0.0
        %380 = vmatprep.subr.mxu0 0.0
        %381 = vmatpush2.xpose.msra.mxu0 0.0
        %382 = vmatprep.subr.mxu0 0.0
        %383 = vmatpush2.xpose.msra.mxu0 0.0
        %384 = vmatprep.mubr.f32.mxu0 0.0
        %385 = vmatmul.mubr.f32.gmra.mxu0 %v294
        %v386 = vpop.f32.mrf.mxu0
        %v387 = vadd.f32 0.0, %v386
        %v388 = vpop.f32.mrf.mxu0
        %389 = vmatprep.mubr.f32.mxu0 0.0
        %390 = vmatmul.mubr.f32.gmra.mxu0 %v297
        %v391 = vpop.f32.mrf.mxu0
        %v392 = vadd.f32 0.0, %v391
        %v393 = vpop.f32.mrf.mxu0
        %394 = vmatprep.mubr.f32.mxu0 0.0
        %395 = vmatmul.mubr.f32.gmra.mxu0 %v300
        %v396 = vpop.f32.mrf.mxu0
        %v397 = vadd.f32 0.0, %v396
        %v398 = vpop.f32.mrf.mxu0
        %399 = vmatprep.mubr.f32.mxu0 0.0
        %400 = vmatmul.mubr.f32.gmra.mxu0 %v303
        %v401 = vpop.f32.mrf.mxu0
        %v402 = vadd.f32 0.0, %v401
        %v403 = vpop.f32.mrf.mxu0
        %404 = vdwg.mxu0
        %vm405 = vcmask 326656
        %v406 = vsel %vm405, %v387, 0.0
        %v407 = vsel %vm405, %v392, 0.0
        %v408 = vsel %vm405, %v397, 0.0
        %v409 = vsel %vm405, %v402, 0.0
        %410 = vst [vmem:[%s260] sm:$0xff] %v406
        %411 = vst [vmem:[%s260 + $0x8] sm:$0xff] 0.0
        %412 = vst [vmem:[%s260 + $0x10] sm:$0xff] %v407
        %413 = vst [vmem:[%s260 + $0x18] sm:$0xff] 0.0
        %414 = vst [vmem:[%s260 + $0x20] sm:$0xff] %v408
        %415 = vst [vmem:[%s260 + $0x28] sm:$0xff] 0.0
        %416 = vst [vmem:[%s260 + $0x30] sm:$0xff] %v409
        %417 = vst [vmem:[%s260 + $0x38] sm:$0xff] 0.0
        %v418 = vld [vmem:[%s3] sm:$0xff]
        %v419 = vld [vmem:[%s3 + $0x8] sm:$0xff]
        %v420 = vld [vmem:[%s3 + $0x10] sm:$0xff]
        %v421 = vld [vmem:[%s3 + $0x18] sm:$0xff]
        %v422 = vld [vmem:[%s277] sm:$0xff]
        %v423 = vld [vmem:[%s277 + $0x8] sm:$0xff]
        %v424 = vld [vmem:[%s4] sm:$0xff]
        %v425 = vld [vmem:[%s4 + $0x8] sm:$0xff]
        %v426 = vld [vmem:[%s4 + $0x10] sm:$0xff]
        %v427 = vld [vmem:[%s4 + $0x18] sm:$0xff]
        %vm428 = vcmask 130048
        %v430 = vsel %vm428, %v418, 0
        %v433 = vsel %vm428, %v419, 0
        %v436 = vsel %vm428, %v420, 0
        %v439 = vsel %vm428, %v421, 0
        %441 = vmatprep.subr.mxu0 0.0
        %442 = vmatpush1.msra.mxu0 0.0
        %443 = vmatprep.subr.mxu0 0.0
        %444 = vmatpush1.msra.mxu0 0.0
        %445 = vmatprep.subr.mxu0 0.0
        %446 = vmatpush1.msra.mxu0 0.0
        %447 = vmatprep.subr.mxu0 0.0
        %448 = vmatpush1.msra.mxu0 0.0
        %449 = vmatprep.subr.mxu0 0.0
        %450 = vmatpush1.msra.mxu0 0.0
        %451 = vmatprep.subr.mxu0 0.0
        %452 = vmatpush1.msra.mxu0 0.0
        %453 = vmatprep.subr.mxu0 0.0
        %454 = vmatpush1.msra.mxu0 0.0
        %455 = vmatprep.subr.mxu0 0.0
        %456 = vmatpush1.msra.mxu0 0.0
        %457 = vmatprep.subr.mxu0 0.0
        %458 = vmatpush1.msra.mxu0 0.0
        %459 = vmatprep.subr.mxu0 0.0
        %460 = vmatpush1.msra.mxu0 0.0
        %461 = vmatprep.subr.mxu0 0.0
        %462 = vmatpush1.msra.mxu0 0.0
        %463 = vmatprep.subr.mxu0 0.0
        %464 = vmatpush1.msra.mxu0 0.0
        %465 = vmatprep.subr.mxu0 0.0
        %466 = vmatpush1.msra.mxu0 0.0
        %467 = vmatprep.subr.mxu0 0.0
        %468 = vmatpush1.msra.mxu0 0.0
        %469 = vmatprep.subr.mxu0 0.0
        %470 = vmatpush1.msra.mxu0 %v423
        %471 = vmatprep.subr.mxu0 0.0
        %472 = vmatpush1.msra.mxu0 %v422
        %473 = vmatprep.subr.mxu0 0.0
        %474 = vmatpush2.msra.mxu0 0.0
        %475 = vmatprep.subr.mxu0 0.0
        %476 = vmatpush2.msra.mxu0 0.0
        %477 = vmatprep.subr.mxu0 0.0
        %478 = vmatpush2.msra.mxu0 0.0
        %479 = vmatprep.subr.mxu0 0.0
        %480 = vmatpush2.msra.mxu0 0.0
        %481 = vmatprep.subr.mxu0 0.0
        %482 = vmatpush2.msra.mxu0 0.0
        %483 = vmatprep.subr.mxu0 0.0
        %484 = vmatpush2.msra.mxu0 0.0
        %485 = vmatprep.subr.mxu0 0.0
        %486 = vmatpush2.msra.mxu0 0.0
        %487 = vmatprep.subr.mxu0 0.0
        %488 = vmatpush2.msra.mxu0 0.0
        %489 = vmatprep.subr.mxu0 0.0
        %490 = vmatpush2.msra.mxu0 0.0
        %491 = vmatprep.subr.mxu0 0.0
        %492 = vmatpush2.msra.mxu0 0.0
        %493 = vmatprep.subr.mxu0 0.0
        %494 = vmatpush2.msra.mxu0 0.0
        %495 = vmatprep.subr.mxu0 0.0
        %496 = vmatpush2.msra.mxu0 0.0
        %497 = vmatprep.subr.mxu0 0.0
        %498 = vmatpush2.msra.mxu0 0.0
        %499 = vmatprep.subr.mxu0 0.0
        %500 = vmatpush2.msra.mxu0 0.0
        %501 = vmatprep.subr.mxu0 0.0
        %502 = vmatpush2.msra.mxu0 0.0
        %503 = vmatprep.subr.mxu0 0.0
        %504 = vmatpush2.msra.mxu0 0.0
        %505 = vmatprep.mubr.f32.mxu0 0.0
        %506 = vmatmul.mubr.f32.gmra.mxu0 %v430
        %v507 = vpop.f32.mrf.mxu0
        %v508 = vadd.f32 %v424, %v507
        %v509 = vpop.f32.mrf.mxu0
        %510 = vmatprep.mubr.f32.mxu0 0.0
        %511 = vmatmul.mubr.f32.gmra.mxu0 %v433
        %v512 = vpop.f32.mrf.mxu0
        %v513 = vadd.f32 %v425, %v512
        %v514 = vpop.f32.mrf.mxu0
        %515 = vmatprep.mubr.f32.mxu0 0.0
        %516 = vmatmul.mubr.f32.gmra.mxu0 %v436
        %v517 = vpop.f32.mrf.mxu0
        %v518 = vadd.f32 %v426, %v517
        %v519 = vpop.f32.mrf.mxu0
        %520 = vmatprep.mubr.f32.mxu0 0.0
        %521 = vmatmul.mubr.f32.gmra.mxu0 %v439
        %v522 = vpop.f32.mrf.mxu0
        %v523 = vadd.f32 %v427, %v522
        %v524 = vpop.f32.mrf.mxu0
        %525 = vdwg.mxu0
        %vm526 = vcmask 7168
        %527 = vst.msk [vmem:[%s282] sm:$0xff] %vm526, %v508
        %528 = vst.msk [vmem:[%s282 + $0x8] sm:$0xff] %vm526, %v513
        %529 = vst.msk [vmem:[%s282 + $0x10] sm:$0xff] %vm526, %v518
        %530 = vst.msk [vmem:[%s282 + $0x18] sm:$0xff] %vm526, %v523
        %s531 = sand.u32 %s144, 1
        %s532 = scalar_lea.sflag [#allocation3], %s531
        %s533 = sand.u32 %s144, 1
        %s534 = smul.addr %s533, 64
        %s535 = scalar_lea.vmem [#allocation2], %s534
        %p536 = scmp.lt.s32.totalorder %s21, 1
        %s537 = scalar_select %p536, %s21, 1
        %s538 = smul.addr %s537, 4
        %s539 = smul.addr %s538, 8
        %s540 = scalar_lea.vmem %s6, %s539
        // Predicated region
        $region41: #{tpu_custom_call.1} parent=39 // pred_check
          %p541 = pneg %p154
        $region42: #{tpu_custom_call.1} parent=39 // pred_check_branch
          %543 = sbr.rel (%p541) target = $region44
        $region43: #{tpu_custom_call.1} parent=39 // pred_region
          %s545 = ssub.s32 1024, 1024
          %546 = vsyncadd %s532, %s545
          %s547 = smul.addr %s21, 8
          %s548 = smul.addr %s547, 128
          %s549 = scalar_lea.hbm %s5, %s548
          %s550 = sshll.u32 %s535, 4
          %s551 = int_to_ptr.vmem [resolvable:$true] %s550
          %556 = dma.vmem_to_hbm [thread:$0]  %s551, 1024, %s549, %s532, 256, 256, 16
        $region44: #{tpu_custom_call.1} parent=39 // pred_fallthru
          _
        // Predicated region
        $region45: #{tpu_custom_call.1} parent=39 // pred_check
          %p557 = pneg %p180
        $region46: #{tpu_custom_call.1} parent=39 // pred_check_branch
          %559 = sbr.rel (%p557) target = $region48
        $region47: #{tpu_custom_call.1} parent=39 // pred_region
          _
        $region48: #{tpu_custom_call.1} parent=39 // pred_fallthru
          _
      $region40: #{tpu_custom_call.1} parent=5 // pred_fallthru
        _
      %p560 = scmp.le.s32.totalorder 2, %s16
      // Predicated region
      $region49: #{tpu_custom_call.1} parent=5 // pred_check
        %p561 = pneg %p560
      $region50: #{tpu_custom_call.1} parent=5 // pred_check_branch
        %563 = sbr.rel (%p561) target = $region52
      $region51: #{tpu_custom_call.1} parent=5 // pred_region
        %s564 = ssub.s32 %s16, 2
        // Predicated region
        $region53: #{tpu_custom_call.1} parent=51 // pred_check
          %p565 = pneg %p160
        $region54: #{tpu_custom_call.1} parent=51 // pred_check_branch
          %567 = sbr.rel (%p565) target = $region56
        $region55: #{tpu_custom_call.1} parent=51 // pred_region
          %s568 = sand.u32 %s145, 1
          %s569 = scalar_lea.sflag [#allocation3], %s568
          %s570 = sand.u32 %s145, 1
          %s571 = smul.addr %s570, 64
          %s572 = scalar_lea.vmem [#allocation2], %s571
          %573 = dma.done %s569, 1024
        $region56: #{tpu_custom_call.1} parent=51 // pred_fallthru
          _
        // Predicated region
        $region57: #{tpu_custom_call.1} parent=51 // pred_check
          %p574 = pneg %p186
        $region58: #{tpu_custom_call.1} parent=51 // pred_check_branch
          %576 = sbr.rel (%p574) target = $region60
        $region59: #{tpu_custom_call.1} parent=51 // pred_region
          %p577 = scmp.lt.s32.totalorder %s22, 1
          %s578 = scalar_select %p577, %s22, 1
          %s579 = smul.addr %s578, 4
          %s580 = smul.addr %s579, 8
          %s581 = scalar_lea.vmem %s6, %s580
        $region60: #{tpu_custom_call.1} parent=51 // pred_fallthru
          _
      $region52: #{tpu_custom_call.1} parent=5 // pred_fallthru
        _
    $region6: #{tpu_custom_call.1} parent=1 // loop_footer
      %s20 = sadd.s32 1, %s16
    $region7: #{tpu_custom_call.1} parent=1 // loop_footer_branch
      %15 = sbr.rel target = $region3
    $region8: #{tpu_custom_call.1} parent=1 // loop_exit
      _
    %582 = vsyncpa [#allocation3], 1
    %s583 = scalar_lea.sflag [#allocation3], 1
    %584 = vsyncpa %s583, 1

</llo_original>
